<compile_context>
chip_gen: v7x
topology: tpu7x:2x2x1
jax: 0.10.0
libtpu: 0.0.40
codegen_flags: <defaults>
</compile_context>

<pallas_src>
import jax
import jax.numpy as jnp
from jax.experimental import pallas as pl
from jax.experimental.pallas import tpu as pltpu


def _round_up(x, m):
    return ((x + m - 1) // m) * m


def _matmul_kernel(w_ref, p_ref, o_ref):
    """One lane-dense MXU matmul tile.

    w_ref: (Cout_pad8, K_pad8)  -- weight, resident in VMEM (constant index_map)
    p_ref: (K_pad8, tile_m)     -- im2col patches tile, lane dim = M
    o_ref: (Cout_pad8, tile_m)  -- unmasked, lane-dense output tile
    """
    o_ref[...] = jnp.dot(
        w_ref[...], p_ref[...], preferred_element_type=jnp.float32
    ).astype(o_ref.dtype)


def getitem_model_forward(input_nchw, weight_oihw, *, tile_m=128, use_bf16=None):
    """Equivalent of GetItemModel.forward: conv2d(input, other)[1].

    input_nchw:  (N, Cin, H, W)      float32, N >= 2
    weight_oihw: (Cout, Cin, KH, KW)
    returns:     (Cout, Hout, Wout)  -- PyTorch's conv_node[1]

    tile_m: M-tile width (multiple of 128).  128 is fine at toy sizes; sweep
            larger (512) for big frames (per-step overhead amortization),
            smaller on v5e (16 MiB scoped-VMEM default).
    """
    n, cin, h, w = input_nchw.shape
    cout, cin_w, kh, kw = weight_oihw.shape
    assert cin == cin_w, "channel mismatch between input and weight"
    assert n >= 2, "getitem [1] requires batch >= 2"
    assert h >= kh and w >= kw, "spatial dims must be >= kernel dims"
    assert tile_m % 128 == 0, "tile_m must keep output stores lane-dense"

    hout, wout = h - kh + 1, w - kw + 1
    m = hout * wout
    k = kh * kw * cin

    k_pad = _round_up(k, 8)           # unmasked MXU feed (sublane-aligned K)
    cout_pad = _round_up(cout, 8)     # sublane-aligned output rows (8x worst case,
                                      # not the 128x lane pad of v1)
    grid_m = pl.cdiv(m, tile_m)
    m_pad = grid_m * tile_m           # lane-dense, unmasked output columns

    # --- getitem BEFORE any layout plumbing: only batch element 1 is touched.
    x1 = input_nchw[1]                                      # (Cin, H, W)

    # --- im2col in XLA (review option (a)): K ordered (cin, kh, kw), matching
    #     a plain reshape of the OIHW weight (no weight transpose needed).
    taps = [x1[:, i:i + hout, j:j + wout]                   # (Cin, Hout, Wout) each
            for i in range(kh) for j in range(kw)]
    patches = jnp.stack(taps, axis=1)                       # (Cin, KH*KW, Hout, Wout)
    patches_t = patches.reshape(k, m)                       # (K, M)
    patches_t = jnp.pad(patches_t, ((0, k_pad - k), (0, m_pad - m)))

    w_t = weight_oihw.reshape(cout, k)                      # (Cout, K) -- OIHW flatten
    w_t = jnp.pad(w_t, ((0, cout_pad - cout), (0, k_pad - k)))

    # bf16 MXU operands for non-toy sizes (peak dtype on v5e/v6e/v7x; v7x has no
    # int MXU, so bf16 is the portable fast path).  Accumulation stays f32.
    if use_bf16 is None:
        use_bf16 = (k_pad >= 256 and m >= 4096)
    if use_bf16:
        w_t = w_t.astype(jnp.bfloat16)
        patches_t = patches_t.astype(jnp.bfloat16)

    flops = 2 * cout_pad * k_pad * m_pad
    bytes_accessed = (w_t.size * w_t.dtype.itemsize
                      + patches_t.size * patches_t.dtype.itemsize
                      + 4 * cout * m)                        # real output bytes

    out = pl.pallas_call(
        _matmul_kernel,
        out_shape=jax.ShapeDtypeStruct((cout_pad, m_pad), input_nchw.dtype),
        grid=(grid_m,),
        in_specs=[
            # Weight: constant index_map -> stays resident in VMEM across tiles.
            pl.BlockSpec((cout_pad, k_pad), lambda i: (0, 0)),
            # Patches: tiled along the lane dim M; pipeline double-buffers it.
            pl.BlockSpec((k_pad, tile_m), lambda i: (0, i)),
        ],
        out_specs=pl.BlockSpec((cout_pad, tile_m), lambda i: (0, i)),
        compiler_params=pltpu.CompilerParams(
            dimension_semantics=("parallel",),               # v7x: both TCs busy
        ),
        cost_estimate=pl.CostEstimate(flops=flops,
                                      transcendentals=0,
                                      bytes_accessed=bytes_accessed),
    )(w_t, patches_t)

    # (Cout_pad8, M_pad) -> slice real extents -> plain reshape (no transpose).
    return out[:cout, :m].reshape(cout, hout, wout)


if __name__ == "__main__":
    key = jax.random.PRNGKey(0)
    k1, k2 = jax.random.split(key)

    # Small deterministic shapes: batch=2, Cin=4, spatial=16, Cout=8, kernel 3x3.
    N, Cin, H, W = 2, 4, 16, 16
    Cout, KH, KW = 8, 3, 3

    x = jax.random.normal(k1, (N, Cin, H, W), dtype=jnp.float32)
    wgt = jax.random.normal(k2, (Cout, Cin, KH, KW), dtype=jnp.float32) * 0.1

    y = getitem_model_forward(x, wgt)
    y = jax.block_until_ready(y)

    # Reference: full-precision conv in NCHW/OIHW, then take batch element [1].
    ref = jax.lax.conv_general_dilated(
        x, wgt, window_strides=(1, 1), padding="VALID",
        dimension_numbers=("NCHW", "OIHW", "NCHW"),
        precision=jax.lax.Precision.HIGHEST)[1]

    assert y.shape == ref.shape == (Cout, H - KH + 1, W - KW + 1)
    assert bool(jnp.allclose(y, ref, atol=1e-3, rtol=1e-3))

    print("KERNEL_OK")
</pallas_src>

<mosaic_0001>
module attributes {stable_mosaic.version = 11 : i64} {
  func.func @_matmul_kernel(%arg0: i32, %arg1: memref<8x40xf32, #tpu.memory_space<vmem>>, %arg2: memref<40x128xf32, #tpu.memory_space<vmem>>, %arg3: memref<8x128xf32, #tpu.memory_space<vmem>>) attributes {dimension_semantics = [#tpu.dimension_semantics<parallel>], iteration_bounds = array<i64: 2>, scalar_prefetch = 0 : i64, scratch_operands = 0 : i64, tpu.core_type = #tpu.core_type<tc>, window_params = [{pipeline_mode = #tpu.pipeline_mode<synchronous>, transform_indices = @transform_0, window_bounds = array<i64: 8, 40>}, {transform_indices = @transform_1, window_bounds = array<i64: 40, 128>}, {transform_indices = @transform_2, window_bounds = array<i64: 8, 128>}]} {
    %c0 = arith.constant 0 : index
    %c0_0 = arith.constant 0 : index
    %0 = vector.load %arg1[%c0, %c0_0] : memref<8x40xf32, #tpu.memory_space<vmem>>, vector<8x40xf32>
    %c0_1 = arith.constant 0 : index
    %c0_2 = arith.constant 0 : index
    %1 = vector.load %arg2[%c0_1, %c0_2] : memref<40x128xf32, #tpu.memory_space<vmem>>, vector<40x128xf32>
    %cst = arith.constant dense<0.000000e+00> : vector<8x128xf32>
    %2 = tpu.matmul %0, %1, %cst {dimension_numbers = #tpu.dot_dimension_numbers<[1], [0], [0], [1], [0, 0, 1, 1], [], []>} : vector<8x40xf32>, vector<40x128xf32>, vector<8x128xf32> -> vector<8x128xf32>
    %c0_3 = arith.constant 0 : index
    %c0_4 = arith.constant 0 : index
    %3 = vector.load %arg3[%c0_3, %c0_4] : memref<8x128xf32, #tpu.memory_space<vmem>>, vector<8x128xf32>
    tpu.vector_store %arg3[%c0_3, %c0_4], %2 {strides = array<i32>} : memref<8x128xf32, #tpu.memory_space<vmem>>, vector<8x128xf32>,
    return
  }
  func.func @transform_0(%arg0: i32) -> (i32, i32) {
    %c0_i32 = arith.constant 0 : i32
    %c0_i32_0 = arith.constant 0 : i32
    %c0_i32_1 = arith.constant 0 : i32
    return %c0_i32, %c0_i32_0 : i32, i32
  }
  func.func @transform_1(%arg0: i32) -> (i32, i32) {
    %c0_i32 = arith.constant 0 : i32
    %c0_i32_0 = arith.constant 0 : i32
    return %c0_i32, %arg0 : i32, i32
  }
  func.func @transform_2(%arg0: i32) -> (i32, i32) {
    %c0_i32 = arith.constant 0 : i32
    %c0_i32_0 = arith.constant 0 : i32
    return %c0_i32, %arg0 : i32, i32
  }
}

</mosaic_0001>

<llo_original>
// kernel: tpu_custom_call.1
$region0: #{tpu_custom_call.1}
  #allocation0 [shape = 'u32[]', space=smem, size = 0x4, offset = 0x4, fixed_abs, tag = 'smem constant byte address 0x4 - core index']
  #allocation1 [shape = 'u32[144,128]{1,0:T(1,128)}', space=vmem, size = 0x12000, scoped, tag = 'internal scratch']
  %s0 = inlined_call_operand.hbm [shape: f32[8,40], index: 0, kind: input, shape index: {}]
  %s1 = inlined_call_operand.hbm [shape: f32[40,256], index: 1, kind: input, shape index: {}]
  %s2 = inlined_call_operand.hbm [shape: f32[8,256], index: 2, kind: output, shape index: {}]
  %s3 = sld [smem:[#allocation0]]
  $region49: #{tpu_custom_call.1} parent=0
    _
  %s5 = ssub.s32 1, %s3
  %s6 = scalar_select 0, %s5, %s3
  $region1: #{tpu_custom_call.1} parent=0
    #allocation2 [shape = 'u8[4096]{0}', space=vmem, size = 0x1000, scoped, tag = 'input window, operand 0, single buffered']
    #allocation3 [shape = 's32[2]{0}', space=sflag, size = 0x8, scoped, tag = 'scoped memory for tpu_custom_call.1']
    #allocation4 [shape = 's32[2]{0}', space=sflag, size = 0x8, scoped, tag = 'scoped memory for tpu_custom_call.1']
    #allocation5 [shape = 'u8[40960]{0}', space=vmem, size = 0xa000, scoped, tag = 'input window, operand 1']
    #allocation6 [shape = 's32[2]{0}', space=sflag, size = 0x8, scoped, tag = 'scoped memory for tpu_custom_call.1']
    #allocation7 [shape = 'u8[8192]{0}', space=vmem, size = 0x2000, scoped, tag = 'output window, operand 0']
    %7 = vsyncpa [#allocation3], 0
    %8 = vsyncpa [#allocation6], 0
    %s9 = scalar_lea.sflag [#allocation6], 1
    %10 = vsyncpa %s9, 0
    %11 = vsyncpa [#allocation4], 0
    %s12 = scalar_lea.sflag [#allocation4], 1
    %13 = vsyncpa %s12, 0
    loop: start=0, step=1, limit=4
    $region2: #{tpu_custom_call.1} parent=1 // loop_pre_header
      _
    $region3: #{tpu_custom_call.1} parent=1 // loop_header
      %s15 = sphi 0, %s19
      %p16 = scmp.ge.s32.totalorder %s15, 4
      %s23 = sphi 0, %s23
      %s25 = sphi 0, %s23
      %s26 = sphi 0, %s25
      %s40 = sphi 0, %s26
      %s46 = sphi 0, %s48
      %s49 = sphi 0, %s46
      %s50 = sphi 0, %s49
      %s66 = sphi 0, %s50
      %s72 = sphi 0, %s74
      %s75 = sphi 0, %s72
      %s76 = sphi 0, %s75
      %s92 = sphi 0, %s76
    $region4: #{tpu_custom_call.1} parent=1 // loop_header_branch
      %18 = sbr.rel (%p16) target = $region8
    $region5: #{tpu_custom_call.1} parent=1 // loop_body
      %s20 = ssub.s32 %s15, 1
      %s21 = ssub.s32 %s15, 2
      %s22 = sadd.s32 %s15, 1
      %s24 = sadd.s32 %s23, 1
      %p27 = scmp.eq.s32.totalorder %s15, 1
      %p28 = scmp.ne.s32.totalorder %s23, %s25
      %p29 = scmp.eq.s32.totalorder %s15, 0
      %p30 = por %p28, %p29
      %p31 = scmp.ne.s32.totalorder %s23, %s25
      %p32 = scmp.eq.s32.totalorder %s20, 1
      %p33 = por %p31, %p32
      %p34 = scmp.ne.s32.totalorder %s25, %s26
      %p35 = scmp.eq.s32.totalorder %s20, 0
      %p36 = por %p34, %p35
      %p37 = scmp.ne.s32.totalorder %s25, %s26
      %p38 = scmp.eq.s32.totalorder %s21, 1
      %p39 = por %p37, %p38
      %p41 = scmp.ne.s32.totalorder %s26, %s40
      %p42 = scmp.eq.s32.totalorder %s21, 0
      %p43 = por %p41, %p42
      %s44 = ssub.s32 %s15, %s22
      %p45 = scmp.eq.s32.totalorder %s44, 0
      %s47 = sadd.s32 %s46, 1
      %s48 = scalar_select %p45, %s46, %s47
      %p51 = pneg %p45
      %p52 = scmp.eq.s32.totalorder %s15, 1
      %p53 = por %p51, %p52
      %p54 = scmp.ne.s32.totalorder %s46, %s49
      %p55 = scmp.eq.s32.totalorder %s15, 0
      %p56 = por %p54, %p55
      %p57 = scmp.ne.s32.totalorder %s46, %s49
      %p58 = scmp.eq.s32.totalorder %s20, 1
      %p59 = por %p57, %p58
      %p60 = scmp.ne.s32.totalorder %s49, %s50
      %p61 = scmp.eq.s32.totalorder %s20, 0
      %p62 = por %p60, %p61
      %p63 = scmp.ne.s32.totalorder %s49, %s50
      %p64 = scmp.eq.s32.totalorder %s21, 1
      %p65 = por %p63, %p64
      %p67 = scmp.ne.s32.totalorder %s50, %s66
      %p68 = scmp.eq.s32.totalorder %s21, 0
      %p69 = por %p67, %p68
      %s70 = ssub.s32 %s15, %s22
      %p71 = scmp.eq.s32.totalorder %s70, 0
      %s73 = sadd.s32 %s72, 1
      %s74 = scalar_select %p71, %s72, %s73
      %p77 = pneg %p71
      %p78 = scmp.eq.s32.totalorder %s15, 1
      %p79 = por %p77, %p78
      %p80 = scmp.ne.s32.totalorder %s72, %s75
      %p81 = scmp.eq.s32.totalorder %s15, 0
      %p82 = por %p80, %p81
      %p83 = scmp.ne.s32.totalorder %s72, %s75
      %p84 = scmp.eq.s32.totalorder %s20, 1
      %p85 = por %p83, %p84
      %p86 = scmp.ne.s32.totalorder %s75, %s76
      %p87 = scmp.eq.s32.totalorder %s20, 0
      %p88 = por %p86, %p87
      %p89 = scmp.ne.s32.totalorder %s75, %s76
      %p90 = scmp.eq.s32.totalorder %s21, 1
      %p91 = por %p89, %p90
      %p93 = scmp.ne.s32.totalorder %s76, %s92
      %p94 = scmp.eq.s32.totalorder %s21, 0
      %p95 = por %p93, %p94
      %p96 = scmp.le.s32.totalorder 1, %s15
      %p97 = scmp.lt.s32.totalorder %s15, 3
      %p98 = pnand %p96, %p97
      %p99 = pneg %p98
      // Predicated region
      $region9: #{tpu_custom_call.1} parent=5 // pred_check
        _
      $region10: #{tpu_custom_call.1} parent=5 // pred_check_branch
        %101 = sbr.rel (%p98) target = $region12
      $region11: #{tpu_custom_call.1} parent=5 // pred_region
        %s102 = ssub.s32 %s15, 1
        // Predicated region
        $region13: #{tpu_custom_call.1} parent=11 // pred_check
          %p103 = pneg %p36
        $region14: #{tpu_custom_call.1} parent=11 // pred_check_branch
          %105 = sbr.rel (%p103) target = $region16
        $region15: #{tpu_custom_call.1} parent=11 // pred_region
          %s107 = ssub.s32 128, 128
          %108 = vsyncadd [#allocation3], %s107
          %s110 = sshll.u32 [#allocation2], 4
          %s111 = int_to_ptr.vmem [resolvable:$true] %s110
          %113 = dma.hbm_to_vmem [thread:$0]  %s0, 128, %s111, [#allocation3]
        $region16: #{tpu_custom_call.1} parent=11 // pred_fallthru
          _
      $region12: #{tpu_custom_call.1} parent=5 // pred_fallthru
        _
      %p114 = scmp.lt.s32.totalorder %s15, 2
      // Predicated region
      $region17: #{tpu_custom_call.1} parent=5 // pred_check
        %p115 = pneg %p114
      $region18: #{tpu_custom_call.1} parent=5 // pred_check_branch
        %117 = sbr.rel (%p115) target = $region20
      $region19: #{tpu_custom_call.1} parent=5 // pred_region
        // Predicated region
        $region21: #{tpu_custom_call.1} parent=19 // pred_check
          %p118 = pneg %p56
        $region22: #{tpu_custom_call.1} parent=19 // pred_check_branch
          %120 = sbr.rel (%p118) target = $region24
        $region23: #{tpu_custom_call.1} parent=19 // pred_region
          %s121 = sand.u32 %s46, 1
          %s122 = scalar_lea.sflag [#allocation6], %s121
          %s123 = sand.u32 %s46, 1
          %s124 = smul.addr %s123, 40
          %s125 = scalar_lea.vmem [#allocation5], %s124
          %s127 = ssub.s32 640, 640
          %128 = vsyncadd %s122, %s127
          %s129 = smul.addr %s15, 128
          %s130 = scalar_lea.hbm %s1, %s129
          %s131 = sshll.u32 %s125, 4
          %s132 = int_to_ptr.vmem [resolvable:$true] %s131
          %137 = dma.hbm_to_vmem [thread:$0]  %s130, 640, %s132, %s122, 256, 128, 8
        $region24: #{tpu_custom_call.1} parent=19 // pred_fallthru
          _
      $region20: #{tpu_custom_call.1} parent=5 // pred_fallthru
        _
      %p138 = scmp.le.s32.totalorder 1, %s15
      %p139 = scmp.lt.s32.totalorder %s15, 3
      %p140 = pnand %p138, %p139
      %p141 = pneg %p140
      // Predicated region
      $region25: #{tpu_custom_call.1} parent=5 // pred_check
        _
      $region26: #{tpu_custom_call.1} parent=5 // pred_check_branch
        %143 = sbr.rel (%p140) target = $region28
      $region27: #{tpu_custom_call.1} parent=5 // pred_region
        %s144 = ssub.s32 %s15, 1
        // Predicated region
        $region29: #{tpu_custom_call.1} parent=27 // pred_check
          %p145 = pneg %p36
        $region30: #{tpu_custom_call.1} parent=27 // pred_check_branch
          %147 = sbr.rel (%p145) target = $region32
        $region31: #{tpu_custom_call.1} parent=27 // pred_region
          %148 = dma.done [#allocation3], 128
        $region32: #{tpu_custom_call.1} parent=27 // pred_fallthru
          _
        %s149 = sand.u32 %s49, 1
        %s150 = scalar_lea.sflag [#allocation6], %s149
        %s151 = sand.u32 %s49, 1
        %s152 = smul.addr %s151, 40
        %s153 = scalar_lea.vmem [#allocation5], %s152
        // Predicated region
        $region33: #{tpu_custom_call.1} parent=27 // pred_check
          %p154 = pneg %p62
        $region34: #{tpu_custom_call.1} parent=27 // pred_check_branch
          %156 = sbr.rel (%p154) target = $region36
        $region35: #{tpu_custom_call.1} parent=27 // pred_region
          %157 = dma.done %s150, 640
        $region36: #{tpu_custom_call.1} parent=27 // pred_fallthru
          _
        %p158 = pneg %p36
        %p159 = pneg %p33
        %s160 = sand.u32 %s49, 1
        %s161 = scalar_lea.sflag [#allocation6], %s160
        %s162 = sand.u32 %s49, 1
        %s163 = smul.addr %s162, 40
        %s164 = scalar_lea.vmem [#allocation5], %s163
        %p165 = pneg %p62
        %p166 = pneg %p59
        %p167 = pneg %p88
        %p168 = pneg %p85
        %s169 = sand.u32 %s75, 1
        %s170 = scalar_lea.sflag [#allocation4], %s169
        %s171 = sand.u32 %s75, 1
        %s172 = smul.addr %s171, 8
        %s173 = scalar_lea.vmem [#allocation7], %s172
        %v174 = vld [vmem:[#allocation2] sm:$0xff]
        %v175 = vld [vmem:[%s153] sm:$0xff]
        %v176 = vld [vmem:[%s153 + $0x8] sm:$0xff]
        %v177 = vld [vmem:[%s153 + $0x10] sm:$0xff]
        %v178 = vld [vmem:[%s153 + $0x18] sm:$0xff]
        %v179 = vld [vmem:[%s153 + $0x20] sm:$0xff]
        %vm180 = vcmask 326656
        %v182 = vsel %vm180, %v174, 0
        %184 = vmatprep.subr.mxu0 0.0
        %185 = vmatpush1.msra.mxu0 %v175
        %186 = vmatprep.subr.mxu0 0.0
        %187 = vmatpush1.msra.mxu0 %v176
        %188 = vmatprep.subr.mxu0 0.0
        %189 = vmatpush1.msra.mxu0 %v177
        %190 = vmatprep.subr.mxu0 0.0
        %191 = vmatpush1.msra.mxu0 %v178
        %192 = vmatprep.subr.mxu0 0.0
        %193 = vmatpush1.msra.mxu0 %v179
        %194 = vmatprep.subr.mxu0 0.0
        %195 = vmatpush1.msra.mxu0 0.0
        %196 = vmatprep.subr.mxu0 0.0
        %197 = vmatpush1.msra.mxu0 0.0
        %198 = vmatprep.subr.mxu0 0.0
        %199 = vmatpush1.msra.mxu0 0.0
        %200 = vmatprep.subr.mxu0 0.0
        %201 = vmatpush1.msra.mxu0 0.0
        %202 = vmatprep.subr.mxu0 0.0
        %203 = vmatpush1.msra.mxu0 0.0
        %204 = vmatprep.subr.mxu0 0.0
        %205 = vmatpush1.msra.mxu0 0.0
        %206 = vmatprep.subr.mxu0 0.0
        %207 = vmatpush1.msra.mxu0 0.0
        %208 = vmatprep.subr.mxu0 0.0
        %209 = vmatpush1.msra.mxu0 0.0
        %210 = vmatprep.subr.mxu0 0.0
        %211 = vmatpush1.msra.mxu0 0.0
        %212 = vmatprep.subr.mxu0 0.0
        %213 = vmatpush1.msra.mxu0 0.0
        %214 = vmatprep.subr.mxu0 0.0
        %215 = vmatpush1.msra.mxu0 0.0
        %216 = vmatprep.subr.mxu0 0.0
        %217 = vmatpush1.msra.mxu0 0.0
        %218 = vmatprep.subr.mxu0 0.0
        %219 = vmatpush1.msra.mxu0 0.0
        %220 = vmatprep.subr.mxu0 0.0
        %221 = vmatpush1.msra.mxu0 0.0
        %222 = vmatprep.subr.mxu0 0.0
        %223 = vmatpush1.msra.mxu0 0.0
        %224 = vmatprep.subr.mxu0 0.0
        %225 = vmatpush1.msra.mxu0 0.0
        %226 = vmatprep.subr.mxu0 0.0
        %227 = vmatpush1.msra.mxu0 0.0
        %228 = vmatprep.subr.mxu0 0.0
        %229 = vmatpush1.msra.mxu0 0.0
        %230 = vmatprep.subr.mxu0 0.0
        %231 = vmatpush1.msra.mxu0 0.0
        %232 = vmatprep.subr.mxu0 0.0
        %233 = vmatpush1.msra.mxu0 0.0
        %234 = vmatprep.subr.mxu0 0.0
        %235 = vmatpush1.msra.mxu0 0.0
        %236 = vmatprep.subr.mxu0 0.0
        %237 = vmatpush1.msra.mxu0 0.0
        %238 = vmatprep.subr.mxu0 0.0
        %239 = vmatpush1.msra.mxu0 0.0
        %240 = vmatprep.subr.mxu0 0.0
        %241 = vmatpush1.msra.mxu0 0.0
        %242 = vmatprep.subr.mxu0 0.0
        %243 = vmatpush1.msra.mxu0 0.0
        %244 = vmatprep.subr.mxu0 0.0
        %245 = vmatpush1.msra.mxu0 0.0
        %246 = vmatprep.subr.mxu0 0.0
        %247 = vmatpush1.msra.mxu0 0.0
        %248 = vmatprep.mubr.f32.mxu0 0.0
        %249 = vmatmul.mubr.f32.gmra.mrb[0].mxu0 %v182
        %v250 = vpop.f32.mrb[0].mxu0
        %v251 = vadd.f32 0.0, %v250
        %v252 = vpop.f32.mrb[0].mxu0
        %253 = vdwg.mxu0
        %254 = vst [vmem:[%s173] sm:$0xff] %v251
        %s255 = sand.u32 %s75, 1
        %s256 = scalar_lea.sflag [#allocation4], %s255
        %s257 = sand.u32 %s75, 1
        %s258 = smul.addr %s257, 8
        %s259 = scalar_lea.vmem [#allocation7], %s258
        // Predicated region
        $region37: #{tpu_custom_call.1} parent=27 // pred_check
          %p260 = pneg %p85
        $region38: #{tpu_custom_call.1} parent=27 // pred_check_branch
          %262 = sbr.rel (%p260) target = $region40
        $region39: #{tpu_custom_call.1} parent=27 // pred_region
          %s264 = ssub.s32 128, 128
          %265 = vsyncadd %s256, %s264
          %s266 = smul.addr %s20, 128
          %s267 = scalar_lea.hbm %s2, %s266
          %s269 = sshll.u32 %s259, 4
          %s270 = int_to_ptr.vmem [resolvable:$true] %s269
          %272 = dma.vmem_to_hbm [thread:$0]  %s270, 128, %s267, %s256
        $region40: #{tpu_custom_call.1} parent=27 // pred_fallthru
          _
      $region28: #{tpu_custom_call.1} parent=5 // pred_fallthru
        _
      %p273 = scmp.le.s32.totalorder 2, %s15
      // Predicated region
      $region41: #{tpu_custom_call.1} parent=5 // pred_check
        %p274 = pneg %p273
      $region42: #{tpu_custom_call.1} parent=5 // pred_check_branch
        %276 = sbr.rel (%p274) target = $region44
      $region43: #{tpu_custom_call.1} parent=5 // pred_region
        %s277 = ssub.s32 %s15, 2
        // Predicated region
        $region45: #{tpu_custom_call.1} parent=43 // pred_check
          %p278 = pneg %p91
        $region46: #{tpu_custom_call.1} parent=43 // pred_check_branch
          %280 = sbr.rel (%p278) target = $region48
        $region47: #{tpu_custom_call.1} parent=43 // pred_region
          %s281 = sand.u32 %s76, 1
          %s282 = scalar_lea.sflag [#allocation4], %s281
          %s283 = sand.u32 %s76, 1
          %s284 = smul.addr %s283, 8
          %s285 = scalar_lea.vmem [#allocation7], %s284
          %286 = dma.done %s282, 128
        $region48: #{tpu_custom_call.1} parent=43 // pred_fallthru
          _
      $region44: #{tpu_custom_call.1} parent=5 // pred_fallthru
        _
    $region6: #{tpu_custom_call.1} parent=1 // loop_footer
      %s19 = sadd.s32 1, %s15
    $region7: #{tpu_custom_call.1} parent=1 // loop_footer_branch
      %14 = sbr.rel target = $region3
    $region8: #{tpu_custom_call.1} parent=1 // loop_exit
      _
    %287 = vsyncpa [#allocation3], 1
    %s288 = scalar_lea.sflag [#allocation3], 1
    %289 = vsyncpa %s288, 1
    %290 = vsyncpa [#allocation6], 1
    %s291 = scalar_lea.sflag [#allocation6], 1
    %292 = vsyncpa %s291, 1
    %293 = vsyncpa [#allocation4], 1
    %s294 = scalar_lea.sflag [#allocation4], 1
    %295 = vsyncpa %s294, 1

</llo_original>
